<compile_context>
chip_gen: v6e
topology: v6e:2x2x1
jax: 0.10.0
libtpu: 0.0.40
codegen_flags: <defaults>
</compile_context>

<pallas_src>
import math

import jax
import jax.numpy as jnp
from jax.experimental import pallas as pl
from jax.experimental.pallas import tpu as pltpu

SUBLANE = 8                      # vreg sublane count
MAX_TILE_B = 4096                # batch-tile cap (amortizes ~0.35 us/step)
MIN_SPLIT_ROWS = 256             # only split across TCs if each gets >= this
VMEM_BUDGET_BYTES = 16 << 20     # conservative vs v7x 32 MiB scoped default


def _round_up(x, m):
    return ((x + m - 1) // m) * m


# ----------------------------- kernel ---------------------------------------
def qnet_kernel(x_ref, w1_ref, b1_ref, w2_ref, b2_ref, w3_ref, b3_ref, o_ref):
    """Fused 3-layer MLP forward: relu(relu(x@W1+b1)@W2+b2)@W3+b3."""
    x = x_ref[...]                                             # [TILE_B, in]
    h1 = jnp.dot(x, w1_ref[...],
                 preferred_element_type=jnp.float32) + b1_ref[...]
    h1 = jnp.maximum(h1, 0.0)                                  # ReLU (f32 VPU)
    h2 = jnp.dot(h1.astype(w2_ref.dtype), w2_ref[...],
                 preferred_element_type=jnp.float32) + b2_ref[...]
    h2 = jnp.maximum(h2, 0.0)                                  # ReLU (f32 VPU)
    out = jnp.dot(h2.astype(w3_ref.dtype), w3_ref[...],
                  preferred_element_type=jnp.float32) + b3_ref[...]
    o_ref[...] = out.astype(o_ref.dtype)                       # narrow store


# ----------------------------- wrapper ---------------------------------------
def prepare_qnet_params(params, compute_dtype=jnp.float32):
    """One-time weight prep (pad/cast) so per-call wrapper work is zero.

    Hidden widths stay at their true size (resident full-extent blocks need no
    (8,128) padding); only the final layer's lane dim is padded, and only to a
    multiple of 8. Biases stay f32 (added after the f32 accumulate)."""
    w1, b1, w2, b2, w3, b3 = params
    out_dim = w3.shape[1]
    out_p = _round_up(out_dim, SUBLANE)

    def padcols(a, cols):
        return jnp.pad(a, ((0, 0), (0, cols - a.shape[1])))

    prepared = (
        w1.astype(compute_dtype), b1.astype(jnp.float32),
        w2.astype(compute_dtype), b2.astype(jnp.float32),
        padcols(w3, out_p).astype(compute_dtype),
        padcols(b3, out_p).astype(jnp.float32),
    )
    return prepared, out_dim


def qnet_forward(obs, prepared, *, tile_b=None):
    """obs: [B, in_dim] f32.  prepared: output of prepare_qnet_params."""
    params_p, out_dim = prepared
    w1, b1, w2, b2, w3, b3 = params_p
    B, in_dim = obs.shape
    h1_dim, h2_dim, out_p = w1.shape[1], w2.shape[1], w3.shape[1]
    compute_dtype = w1.dtype
    in_itemsize = jnp.dtype(compute_dtype).itemsize

    # --- batch tile choice -------------------------------------------------
    # Big tiles amortize the ~0.35 us grid-step overhead; when the batch is
    # large enough, split into >=2 tiles so v7x's second TensorCore gets work.
    if tile_b is None:
        if B >= 2 * MIN_SPLIT_ROWS:
            tile_b = _round_up(-(-B // 2), SUBLANE)
        else:
            tile_b = _round_up(max(B, 1), SUBLANE)
        tile_b = min(tile_b, MAX_TILE_B)
    tile_b = max(SUBLANE, _round_up(int(tile_b), SUBLANE))

    # Clamp tile_b so double-buffered streamed tiles stay well under VMEM.
    per_row_bytes = 2 * (in_dim * in_itemsize + out_p * 4)  # dbl-buffered in+out
    vmem_tile_cap = max(SUBLANE,
                        (VMEM_BUDGET_BYTES // max(per_row_bytes, 1))
                        // SUBLANE * SUBLANE)
    tile_b = min(tile_b, vmem_tile_cap)

    grid_b = pl.cdiv(B, tile_b)
    b_pad = grid_b * tile_b

    x = obs.astype(compute_dtype)
    if b_pad != B:
        x = jnp.pad(x, ((0, b_pad - B), (0, 0)))

    weight_bytes = sum(a.size * a.dtype.itemsize
                       for a in (w1, b1, w2, b2, w3, b3))
    flops = 2 * b_pad * (in_dim * h1_dim + h1_dim * h2_dim + h2_dim * out_p)
    bytes_accessed = (x.size * x.dtype.itemsize
                      + weight_bytes
                      + b_pad * out_p * 4)
    tile_bytes = tile_b * (in_dim * in_itemsize + out_p * 4)
    vmem_limit = int(min(32 << 20,
                         max(8 << 20, 4 * tile_bytes + weight_bytes + (1 << 20))))

    def resident(shape):  # same block every grid step -> stays VMEM-resident
        return pl.BlockSpec(shape, lambda i: (0, 0))

    out = pl.pallas_call(
        qnet_kernel,
        out_shape=jax.ShapeDtypeStruct((b_pad, out_p), jnp.float32),
        grid=(grid_b,),
        in_specs=[
            pl.BlockSpec((tile_b, in_dim), lambda i: (i, 0)),   # streamed obs
            resident((in_dim, h1_dim)),
            resident((1, h1_dim)),
            resident((h1_dim, h2_dim)),
            resident((1, h2_dim)),
            resident((h2_dim, out_p)),
            resident((1, out_p)),
        ],
        out_specs=pl.BlockSpec((tile_b, out_p), lambda i: (i, 0)),
        compiler_params=pltpu.CompilerParams(
            dimension_semantics=("parallel",),                  # v7x megacore
            vmem_limit_bytes=vmem_limit,
        ),
        cost_estimate=pl.CostEstimate(
            flops=flops, transcendentals=0, bytes_accessed=bytes_accessed),
    )(x, w1, b1, w2, b2, w3, b3)

    return out[:B, :out_dim]


# ----------------------------- init (matches PyTorch) -----------------------
def xavier_uniform(key, fan_in, fan_out):
    # torch.nn.init.xavier_uniform_ on nn.Linear.weight, stored as [in, out].
    bound = math.sqrt(6.0 / (fan_in + fan_out))
    return jax.random.uniform(
        key, (fan_in, fan_out), minval=-bound, maxval=bound, dtype=jnp.float32)


def linear_bias(key, fan_in, fan_out):
    # PyTorch nn.Linear default bias init: U(-1/sqrt(fan_in), 1/sqrt(fan_in)).
    bound = 1.0 / math.sqrt(fan_in)
    return jax.random.uniform(
        key, (1, fan_out), minval=-bound, maxval=bound, dtype=jnp.float32)


def init_qnet_params(key, input_dim, output_dim, hidden_layers=(32, 32)):
    h1, h2 = hidden_layers
    k = jax.random.split(key, 6)
    return (
        xavier_uniform(k[0], input_dim, h1), linear_bias(k[1], input_dim, h1),
        xavier_uniform(k[2], h1, h2), linear_bias(k[3], h1, h2),
        xavier_uniform(k[4], h2, output_dim), linear_bias(k[5], h2, output_dim),
    )


# ----------------------------- references -----------------------------------
def qnet_reference_f32(obs, params):
    """Pure-f32 reference (matches the PyTorch module semantics)."""
    w1, b1, w2, b2, w3, b3 = params
    hi = jax.lax.Precision.HIGHEST
    h1 = jnp.maximum(jnp.dot(obs, w1, precision=hi) + b1, 0.0)
    h2 = jnp.maximum(jnp.dot(h1, w2, precision=hi) + b2, 0.0)
    return jnp.dot(h2, w3, precision=hi) + b3


def qnet_reference_bf16(obs, params, compute_dtype=jnp.bfloat16):
    """Reference matching the bf16-weight / f32-accumulate compute path."""
    w1, b1, w2, b2, w3, b3 = params
    x = obs.astype(compute_dtype)
    h1 = jnp.dot(x, w1.astype(compute_dtype),
                 preferred_element_type=jnp.float32) + b1
    h1 = jnp.maximum(h1, 0.0)
    h2 = jnp.dot(h1.astype(compute_dtype), w2.astype(compute_dtype),
                 preferred_element_type=jnp.float32) + b2
    h2 = jnp.maximum(h2, 0.0)
    return jnp.dot(h2.astype(compute_dtype), w3.astype(compute_dtype),
                   preferred_element_type=jnp.float32) + b3


if __name__ == "__main__":
    key = jax.random.PRNGKey(0)
    k_params, k_obs, k_obs2 = jax.random.split(key, 3)

    input_dim = 4      # CartPole-style observation dim
    output_dim = 2     # number of discrete actions
    hidden_layers = (32, 32)
    params = init_qnet_params(k_params, input_dim, output_dim, hidden_layers)

    # Default f32 path (matches PyTorch module numerics).
    prepared_f32 = prepare_qnet_params(params, compute_dtype=jnp.float32)

    # --- small batch (single grid step) ---
    batch = 8
    obs = jax.random.normal(k_obs, (batch, input_dim), dtype=jnp.float32)
    out = jax.block_until_ready(qnet_forward(obs, prepared_f32))
    assert out.shape == (batch, output_dim)
    assert jnp.allclose(out, qnet_reference_f32(obs, params),
                        atol=2e-2, rtol=2e-2)

    # --- non-divisible batch + multiple grid steps (exercises tiling/padding) ---
    batch2 = 40
    obs2 = jax.random.normal(k_obs2, (batch2, input_dim), dtype=jnp.float32)
    out2 = jax.block_until_ready(qnet_forward(obs2, prepared_f32, tile_b=16))
    assert out2.shape == (batch2, output_dim)
    assert jnp.allclose(out2, qnet_reference_f32(obs2, params),
                        atol=2e-2, rtol=2e-2)

    # --- optional bf16-weight path (validated against its own reference) ---
    prepared_bf16 = prepare_qnet_params(params, compute_dtype=jnp.bfloat16)
    out3 = jax.block_until_ready(qnet_forward(obs2, prepared_bf16, tile_b=16))
    assert out3.shape == (batch2, output_dim)
    assert jnp.allclose(out3, qnet_reference_bf16(obs2, params),
                        atol=1e-4, rtol=1e-4)

    print("KERNEL_OK")
</pallas_src>

<mosaic_0001>
module attributes {stable_mosaic.version = 11 : i64} {
  func.func @qnet_kernel(%arg0: i32, %arg1: memref<8x4xf32, #tpu.memory_space<vmem>>, %arg2: memref<4x32xf32, #tpu.memory_space<vmem>>, %arg3: memref<1x32xf32, #tpu.memory_space<vmem>>, %arg4: memref<32x32xf32, #tpu.memory_space<vmem>>, %arg5: memref<1x32xf32, #tpu.memory_space<vmem>>, %arg6: memref<32x8xf32, #tpu.memory_space<vmem>>, %arg7: memref<1x8xf32, #tpu.memory_space<vmem>>, %arg8: memref<8x8xf32, #tpu.memory_space<vmem>>) attributes {dimension_semantics = [#tpu.dimension_semantics<parallel>], iteration_bounds = array<i64: 1>, scalar_prefetch = 0 : i64, scratch_operands = 0 : i64, tpu.core_type = #tpu.core_type<tc>, window_params = [{transform_indices = @transform_0, window_bounds = array<i64: 8, 4>}, {pipeline_mode = #tpu.pipeline_mode<synchronous>, transform_indices = @transform_1, window_bounds = array<i64: 4, 32>}, {pipeline_mode = #tpu.pipeline_mode<synchronous>, transform_indices = @transform_2, window_bounds = array<i64: 1, 32>}, {pipeline_mode = #tpu.pipeline_mode<synchronous>, transform_indices = @transform_3, window_bounds = array<i64: 32, 32>}, {pipeline_mode = #tpu.pipeline_mode<synchronous>, transform_indices = @transform_4, window_bounds = array<i64: 1, 32>}, {pipeline_mode = #tpu.pipeline_mode<synchronous>, transform_indices = @transform_5, window_bounds = array<i64: 32, 8>}, {pipeline_mode = #tpu.pipeline_mode<synchronous>, transform_indices = @transform_6, window_bounds = array<i64: 1, 8>}, {transform_indices = @transform_7, window_bounds = array<i64: 8, 8>}]} {
    %c0 = arith.constant 0 : index
    %c0_0 = arith.constant 0 : index
    %0 = vector.load %arg1[%c0, %c0_0] : memref<8x4xf32, #tpu.memory_space<vmem>>, vector<8x4xf32>
    %c0_1 = arith.constant 0 : index
    %c0_2 = arith.constant 0 : index
    %1 = vector.load %arg2[%c0_1, %c0_2] : memref<4x32xf32, #tpu.memory_space<vmem>>, vector<4x32xf32>
    %cst = arith.constant dense<0.000000e+00> : vector<8x32xf32>
    %2 = tpu.matmul %0, %1, %cst {dimension_numbers = #tpu.dot_dimension_numbers<[1], [0], [0], [1], [0, 0, 1, 1], [], []>} : vector<8x4xf32>, vector<4x32xf32>, vector<8x32xf32> -> vector<8x32xf32>
    %c0_3 = arith.constant 0 : index
    %c0_4 = arith.constant 0 : index
    %3 = vector.load %arg3[%c0_3, %c0_4] : memref<1x32xf32, #tpu.memory_space<vmem>>, vector<1x32xf32>
    %4 = vector.broadcast %3 : vector<1x32xf32> to vector<8x32xf32>
    %5 = arith.addf %2, %4 : vector<8x32xf32>
    %cst_5 = arith.constant 0.000000e+00 : f32
    %6 = vector.broadcast %cst_5 : f32 to vector<8x32xf32>
    %7 = arith.maximumf %5, %6 : vector<8x32xf32>
    %c0_6 = arith.constant 0 : index
    %c0_7 = arith.constant 0 : index
    %8 = vector.load %arg4[%c0_6, %c0_7] : memref<32x32xf32, #tpu.memory_space<vmem>>, vector<32x32xf32>
    %cst_8 = arith.constant dense<0.000000e+00> : vector<8x32xf32>
    %9 = tpu.matmul %7, %8, %cst_8 {dimension_numbers = #tpu.dot_dimension_numbers<[1], [0], [0], [1], [0, 0, 1, 1], [], []>} : vector<8x32xf32>, vector<32x32xf32>, vector<8x32xf32> -> vector<8x32xf32>
    %c0_9 = arith.constant 0 : index
    %c0_10 = arith.constant 0 : index
    %10 = vector.load %arg5[%c0_9, %c0_10] : memref<1x32xf32, #tpu.memory_space<vmem>>, vector<1x32xf32>
    %11 = vector.broadcast %10 : vector<1x32xf32> to vector<8x32xf32>
    %12 = arith.addf %9, %11 : vector<8x32xf32>
    %cst_11 = arith.constant 0.000000e+00 : f32
    %13 = vector.broadcast %cst_11 : f32 to vector<8x32xf32>
    %14 = arith.maximumf %12, %13 : vector<8x32xf32>
    %c0_12 = arith.constant 0 : index
    %c0_13 = arith.constant 0 : index
    %15 = vector.load %arg6[%c0_12, %c0_13] : memref<32x8xf32, #tpu.memory_space<vmem>>, vector<32x8xf32>
    %cst_14 = arith.constant dense<0.000000e+00> : vector<8x8xf32>
    %16 = tpu.matmul %14, %15, %cst_14 {dimension_numbers = #tpu.dot_dimension_numbers<[1], [0], [0], [1], [0, 0, 1, 1], [], []>} : vector<8x32xf32>, vector<32x8xf32>, vector<8x8xf32> -> vector<8x8xf32>
    %c0_15 = arith.constant 0 : index
    %c0_16 = arith.constant 0 : index
    %17 = vector.load %arg7[%c0_15, %c0_16] : memref<1x8xf32, #tpu.memory_space<vmem>>, vector<1x8xf32>
    %18 = vector.broadcast %17 : vector<1x8xf32> to vector<8x8xf32>
    %19 = arith.addf %16, %18 : vector<8x8xf32>
    %c0_17 = arith.constant 0 : index
    %c0_18 = arith.constant 0 : index
    %20 = vector.load %arg8[%c0_17, %c0_18] : memref<8x8xf32, #tpu.memory_space<vmem>>, vector<8x8xf32>
    tpu.vector_store %arg8[%c0_17, %c0_18], %19 {strides = array<i32>} : memref<8x8xf32, #tpu.memory_space<vmem>>, vector<8x8xf32>,
    return
  }
  func.func @transform_0(%arg0: i32) -> (i32, i32) {
    %c0_i32 = arith.constant 0 : i32
    %c0_i32_0 = arith.constant 0 : i32
    return %arg0, %c0_i32 : i32, i32
  }
  func.func @transform_1(%arg0: i32) -> (i32, i32) {
    %c0_i32 = arith.constant 0 : i32
    %c0_i32_0 = arith.constant 0 : i32
    %c0_i32_1 = arith.constant 0 : i32
    return %c0_i32, %c0_i32_0 : i32, i32
  }
  func.func @transform_2(%arg0: i32) -> (i32, i32) {
    %c0_i32 = arith.constant 0 : i32
    %c0_i32_0 = arith.constant 0 : i32
    %c0_i32_1 = arith.constant 0 : i32
    return %c0_i32, %c0_i32_0 : i32, i32
  }
  func.func @transform_3(%arg0: i32) -> (i32, i32) {
    %c0_i32 = arith.constant 0 : i32
    %c0_i32_0 = arith.constant 0 : i32
    %c0_i32_1 = arith.constant 0 : i32
    return %c0_i32, %c0_i32_0 : i32, i32
  }
  func.func @transform_4(%arg0: i32) -> (i32, i32) {
    %c0_i32 = arith.constant 0 : i32
    %c0_i32_0 = arith.constant 0 : i32
    %c0_i32_1 = arith.constant 0 : i32
    return %c0_i32, %c0_i32_0 : i32, i32
  }
  func.func @transform_5(%arg0: i32) -> (i32, i32) {
    %c0_i32 = arith.constant 0 : i32
    %c0_i32_0 = arith.constant 0 : i32
    %c0_i32_1 = arith.constant 0 : i32
    return %c0_i32, %c0_i32_0 : i32, i32
  }
  func.func @transform_6(%arg0: i32) -> (i32, i32) {
    %c0_i32 = arith.constant 0 : i32
    %c0_i32_0 = arith.constant 0 : i32
    %c0_i32_1 = arith.constant 0 : i32
    return %c0_i32, %c0_i32_0 : i32, i32
  }
  func.func @transform_7(%arg0: i32) -> (i32, i32) {
    %c0_i32 = arith.constant 0 : i32
    %c0_i32_0 = arith.constant 0 : i32
    return %arg0, %c0_i32 : i32, i32
  }
}

</mosaic_0001>

<llo_original>
// kernel: tpu_custom_call.1
$region0: #{tpu_custom_call.1}
  #allocation0 [shape = 'u32[]', space=smem, size = 0x4, offset = 0x4, fixed_abs, tag = 'smem constant byte address 0x4 - core index']
  #allocation1 [shape = 'u32[144,128]{1,0:T(1,128)}', space=vmem, size = 0x12000, scoped, tag = 'internal scratch']
  %s0 = inlined_call_operand.vmem [shape: f32[8,4], index: 0, kind: input, shape index: {}]
  %s1 = inlined_call_operand.vmem [shape: f32[4,32], index: 1, kind: input, shape index: {}]
  %s2 = inlined_call_operand.vmem [shape: f32[1,32], index: 2, kind: input, shape index: {}]
  %s3 = inlined_call_operand.vmem [shape: f32[32,32], index: 3, kind: input, shape index: {}]
  %s4 = inlined_call_operand.vmem [shape: f32[1,32], index: 4, kind: input, shape index: {}]
  %s5 = inlined_call_operand.vmem [shape: f32[32,8], index: 5, kind: input, shape index: {}]
  %s6 = inlined_call_operand.vmem [shape: f32[1,8], index: 6, kind: input, shape index: {}]
  %s7 = inlined_call_operand.hbm [shape: f32[8,8], index: 7, kind: output, shape index: {}]
  %s8 = sld [smem:[#allocation0]]
  $region38: #{tpu_custom_call.1} parent=0
    _
  %s10 = ssub.s32 1, %s8
  %s11 = scalar_select 0, %s10, %s8
  $region1: #{tpu_custom_call.1} parent=0
    #allocation2 [shape = 'u8[4096]{0}', space=vmem, size = 0x1000, scoped, tag = 'output window, operand 0, single buffered']
    #allocation3 [shape = 's32[1]{0}', space=sflag, size = 0x4, scoped, tag = 'scoped memory for tpu_custom_call.1']
    %12 = vsyncpa [#allocation3], 0
    // Predicated region
    $region2: #{tpu_custom_call.1} parent=1 // pred_check
      _
    $region3: #{tpu_custom_call.1} parent=1 // pred_check_branch
      %14 = sbr.rel (0) target = $region5
    $region4: #{tpu_custom_call.1} parent=1 // pred_region
      _
    $region5: #{tpu_custom_call.1} parent=1 // pred_fallthru
      _
    // Predicated region
    $region6: #{tpu_custom_call.1} parent=1 // pred_check
      _
    $region7: #{tpu_custom_call.1} parent=1 // pred_check_branch
      %16 = sbr.rel (0) target = $region9
    $region8: #{tpu_custom_call.1} parent=1 // pred_region
      _
    $region9: #{tpu_custom_call.1} parent=1 // pred_fallthru
      _
    // Predicated region
    $region10: #{tpu_custom_call.1} parent=1 // pred_check
      _
    $region11: #{tpu_custom_call.1} parent=1 // pred_check_branch
      %18 = sbr.rel (0) target = $region13
    $region12: #{tpu_custom_call.1} parent=1 // pred_region
      _
    $region13: #{tpu_custom_call.1} parent=1 // pred_fallthru
      _
    // Predicated region
    $region14: #{tpu_custom_call.1} parent=1 // pred_check
      _
    $region15: #{tpu_custom_call.1} parent=1 // pred_check_branch
      %20 = sbr.rel (0) target = $region17
    $region16: #{tpu_custom_call.1} parent=1 // pred_region
      _
    $region17: #{tpu_custom_call.1} parent=1 // pred_fallthru
      _
    // Predicated region
    $region18: #{tpu_custom_call.1} parent=1 // pred_check
      _
    $region19: #{tpu_custom_call.1} parent=1 // pred_check_branch
      %22 = sbr.rel (0) target = $region21
    $region20: #{tpu_custom_call.1} parent=1 // pred_region
      _
    $region21: #{tpu_custom_call.1} parent=1 // pred_fallthru
      _
    // Predicated region
    $region22: #{tpu_custom_call.1} parent=1 // pred_check
      _
    $region23: #{tpu_custom_call.1} parent=1 // pred_check_branch
      %24 = sbr.rel (0) target = $region25
    $region24: #{tpu_custom_call.1} parent=1 // pred_region
      _
    $region25: #{tpu_custom_call.1} parent=1 // pred_fallthru
      _
    // Predicated region
    $region26: #{tpu_custom_call.1} parent=1 // pred_check
      _
    $region27: #{tpu_custom_call.1} parent=1 // pred_check_branch
      %26 = sbr.rel (0) target = $region29
    $region28: #{tpu_custom_call.1} parent=1 // pred_region
      _
    $region29: #{tpu_custom_call.1} parent=1 // pred_fallthru
      _
    %v27 = vld [vmem:[%s0] sm:$0xff]
    %v28 = vld [vmem:[%s1] sm:$0xf]
    %v29 = vld [vmem:[%s2] sm:$0x1]
    %v31 = vlaneseq
    %v32 = vshrl.u32 %v31, 7
    %v33 = vsub.s32 0, %v32
    %v34 = vrot.slane %v29, %v33
    %vm36 = vcmask 31744
    %v38 = vsel %vm36, %v27, 0
    %vm40 = vcmask 1043456
    %v42 = vsel %vm40, %v28, 0
    %44 = vmatprep.subr.mxu0 0.0
    %45 = vmatpush1.msra.mxu0 0.0
    %46 = vmatprep.subr.mxu0 0.0
    %47 = vmatpush1.msra.mxu0 0.0
    %48 = vmatprep.subr.mxu0 0.0
    %49 = vmatpush1.msra.mxu0 0.0
    %50 = vmatprep.subr.mxu0 0.0
    %51 = vmatpush1.msra.mxu0 0.0
    %52 = vmatprep.subr.mxu0 0.0
    %53 = vmatpush1.msra.mxu0 0.0
    %54 = vmatprep.subr.mxu0 0.0
    %55 = vmatpush1.msra.mxu0 0.0
    %56 = vmatprep.subr.mxu0 0.0
    %57 = vmatpush1.msra.mxu0 0.0
    %58 = vmatprep.subr.mxu0 0.0
    %59 = vmatpush1.msra.mxu0 0.0
    %60 = vmatprep.subr.mxu0 0.0
    %61 = vmatpush1.msra.mxu0 0.0
    %62 = vmatprep.subr.mxu0 0.0
    %63 = vmatpush1.msra.mxu0 0.0
    %64 = vmatprep.subr.mxu0 0.0
    %65 = vmatpush1.msra.mxu0 0.0
    %66 = vmatprep.subr.mxu0 0.0
    %67 = vmatpush1.msra.mxu0 0.0
    %68 = vmatprep.subr.mxu0 0.0
    %69 = vmatpush1.msra.mxu0 0.0
    %70 = vmatprep.subr.mxu0 0.0
    %71 = vmatpush1.msra.mxu0 0.0
    %72 = vmatprep.subr.mxu0 0.0
    %73 = vmatpush1.msra.mxu0 0.0
    %74 = vmatprep.subr.mxu0 0.0
    %75 = vmatpush1.msra.mxu0 %v42
    %76 = vmatprep.subr.mxu0 0.0
    %77 = vmatpush2.msra.mxu0 0.0
    %78 = vmatprep.subr.mxu0 0.0
    %79 = vmatpush2.msra.mxu0 0.0
    %80 = vmatprep.subr.mxu0 0.0
    %81 = vmatpush2.msra.mxu0 0.0
    %82 = vmatprep.subr.mxu0 0.0
    %83 = vmatpush2.msra.mxu0 0.0
    %84 = vmatprep.subr.mxu0 0.0
    %85 = vmatpush2.msra.mxu0 0.0
    %86 = vmatprep.subr.mxu0 0.0
    %87 = vmatpush2.msra.mxu0 0.0
    %88 = vmatprep.subr.mxu0 0.0
    %89 = vmatpush2.msra.mxu0 0.0
    %90 = vmatprep.subr.mxu0 0.0
    %91 = vmatpush2.msra.mxu0 0.0
    %92 = vmatprep.subr.mxu0 0.0
    %93 = vmatpush2.msra.mxu0 0.0
    %94 = vmatprep.subr.mxu0 0.0
    %95 = vmatpush2.msra.mxu0 0.0
    %96 = vmatprep.subr.mxu0 0.0
    %97 = vmatpush2.msra.mxu0 0.0
    %98 = vmatprep.subr.mxu0 0.0
    %99 = vmatpush2.msra.mxu0 0.0
    %100 = vmatprep.subr.mxu0 0.0
    %101 = vmatpush2.msra.mxu0 0.0
    %102 = vmatprep.subr.mxu0 0.0
    %103 = vmatpush2.msra.mxu0 0.0
    %104 = vmatprep.subr.mxu0 0.0
    %105 = vmatpush2.msra.mxu0 0.0
    %106 = vmatprep.subr.mxu0 0.0
    %107 = vmatpush2.msra.mxu0 0.0
    %108 = vmatprep.mubr.f32.mxu0 0.0
    %109 = vmatmul.mubr.f32.gmra.mxu0 %v38
    %v110 = vpop.f32.mrf.mxu0
    %v111 = vadd.f32 %v34, %v110
    %v112 = vpop.f32.mrf.mxu0
    %113 = vdwg.mxu0
    %v114 = vmax.f32 %v111, 0.0
    %v115 = vld [vmem:[%s3] sm:$0xff]
    %v116 = vld [vmem:[%s3 + $0x8] sm:$0xff]
    %v117 = vld [vmem:[%s3 + $0x10] sm:$0xff]
    %v118 = vld [vmem:[%s3 + $0x18] sm:$0xff]
    %v119 = vld [vmem:[%s4] sm:$0x1]
    %v121 = vlaneseq
    %v122 = vshrl.u32 %v121, 7
    %v123 = vsub.s32 0, %v122
    %v124 = vrot.slane %v119, %v123
    %vm126 = vcmask 261120
    %v128 = vsel %vm126, %v114, 0
    %130 = vmatprep.subr.mxu0 0.0
    %131 = vmatpush1.msra.mxu0 0.0
    %132 = vmatprep.subr.mxu0 0.0
    %133 = vmatpush1.msra.mxu0 0.0
    %134 = vmatprep.subr.mxu0 0.0
    %135 = vmatpush1.msra.mxu0 0.0
    %136 = vmatprep.subr.mxu0 0.0
    %137 = vmatpush1.msra.mxu0 0.0
    %138 = vmatprep.subr.mxu0 0.0
    %139 = vmatpush1.msra.mxu0 0.0
    %140 = vmatprep.subr.mxu0 0.0
    %141 = vmatpush1.msra.mxu0 0.0
    %142 = vmatprep.subr.mxu0 0.0
    %143 = vmatpush1.msra.mxu0 0.0
    %144 = vmatprep.subr.mxu0 0.0
    %145 = vmatpush1.msra.mxu0 0.0
    %146 = vmatprep.subr.mxu0 0.0
    %147 = vmatpush1.msra.mxu0 0.0
    %148 = vmatprep.subr.mxu0 0.0
    %149 = vmatpush1.msra.mxu0 0.0
    %150 = vmatprep.subr.mxu0 0.0
    %151 = vmatpush1.msra.mxu0 0.0
    %152 = vmatprep.subr.mxu0 0.0
    %153 = vmatpush1.msra.mxu0 0.0
    %154 = vmatprep.subr.mxu0 0.0
    %155 = vmatpush1.msra.mxu0 %v118
    %156 = vmatprep.subr.mxu0 0.0
    %157 = vmatpush1.msra.mxu0 %v117
    %158 = vmatprep.subr.mxu0 0.0
    %159 = vmatpush1.msra.mxu0 %v116
    %160 = vmatprep.subr.mxu0 0.0
    %161 = vmatpush1.msra.mxu0 %v115
    %162 = vmatprep.subr.mxu0 0.0
    %163 = vmatpush2.msra.mxu0 0.0
    %164 = vmatprep.subr.mxu0 0.0
    %165 = vmatpush2.msra.mxu0 0.0
    %166 = vmatprep.subr.mxu0 0.0
    %167 = vmatpush2.msra.mxu0 0.0
    %168 = vmatprep.subr.mxu0 0.0
    %169 = vmatpush2.msra.mxu0 0.0
    %170 = vmatprep.subr.mxu0 0.0
    %171 = vmatpush2.msra.mxu0 0.0
    %172 = vmatprep.subr.mxu0 0.0
    %173 = vmatpush2.msra.mxu0 0.0
    %174 = vmatprep.subr.mxu0 0.0
    %175 = vmatpush2.msra.mxu0 0.0
    %176 = vmatprep.subr.mxu0 0.0
    %177 = vmatpush2.msra.mxu0 0.0
    %178 = vmatprep.subr.mxu0 0.0
    %179 = vmatpush2.msra.mxu0 0.0
    %180 = vmatprep.subr.mxu0 0.0
    %181 = vmatpush2.msra.mxu0 0.0
    %182 = vmatprep.subr.mxu0 0.0
    %183 = vmatpush2.msra.mxu0 0.0
    %184 = vmatprep.subr.mxu0 0.0
    %185 = vmatpush2.msra.mxu0 0.0
    %186 = vmatprep.subr.mxu0 0.0
    %187 = vmatpush2.msra.mxu0 0.0
    %188 = vmatprep.subr.mxu0 0.0
    %189 = vmatpush2.msra.mxu0 0.0
    %190 = vmatprep.subr.mxu0 0.0
    %191 = vmatpush2.msra.mxu0 0.0
    %192 = vmatprep.subr.mxu0 0.0
    %193 = vmatpush2.msra.mxu0 0.0
    %194 = vmatprep.mubr.f32.mxu0 0.0
    %195 = vmatmul.mubr.f32.gmra.mxu0 %v128
    %v196 = vpop.f32.mrf.mxu0
    %v197 = vadd.f32 %v124, %v196
    %v198 = vpop.f32.mrf.mxu0
    %199 = vdwg.mxu0
    %v200 = vmax.f32 %v197, 0.0
    %v201 = vld [vmem:[%s5] sm:$0xff]
    %v202 = vld [vmem:[%s5 + $0x8] sm:$0xff]
    %v203 = vld [vmem:[%s5 + $0x10] sm:$0xff]
    %v204 = vld [vmem:[%s5 + $0x18] sm:$0xff]
    %v205 = vld [vmem:[%s6] sm:$0x1]
    %v207 = vlaneseq
    %v208 = vshrl.u32 %v207, 7
    %v209 = vsub.s32 0, %v208
    %v210 = vrot.slane %v205, %v209
    %v213 = vsel %vm126, %v200, 0
    %215 = vmatprep.subr.mxu0 0.0
    %216 = vmatpush1.msra.mxu0 0.0
    %217 = vmatprep.subr.mxu0 0.0
    %218 = vmatpush1.msra.mxu0 0.0
    %219 = vmatprep.subr.mxu0 0.0
    %220 = vmatpush1.msra.mxu0 0.0
    %221 = vmatprep.subr.mxu0 0.0
    %222 = vmatpush1.msra.mxu0 0.0
    %223 = vmatprep.subr.mxu0 0.0
    %224 = vmatpush1.msra.mxu0 0.0
    %225 = vmatprep.subr.mxu0 0.0
    %226 = vmatpush1.msra.mxu0 0.0
    %227 = vmatprep.subr.mxu0 0.0
    %228 = vmatpush1.msra.mxu0 0.0
    %229 = vmatprep.subr.mxu0 0.0
    %230 = vmatpush1.msra.mxu0 0.0
    %231 = vmatprep.subr.mxu0 0.0
    %232 = vmatpush1.msra.mxu0 0.0
    %233 = vmatprep.subr.mxu0 0.0
    %234 = vmatpush1.msra.mxu0 0.0
    %235 = vmatprep.subr.mxu0 0.0
    %236 = vmatpush1.msra.mxu0 0.0
    %237 = vmatprep.subr.mxu0 0.0
    %238 = vmatpush1.msra.mxu0 0.0
    %239 = vmatprep.subr.mxu0 0.0
    %240 = vmatpush1.msra.mxu0 %v204
    %241 = vmatprep.subr.mxu0 0.0
    %242 = vmatpush1.msra.mxu0 %v203
    %243 = vmatprep.subr.mxu0 0.0
    %244 = vmatpush1.msra.mxu0 %v202
    %245 = vmatprep.subr.mxu0 0.0
    %246 = vmatpush1.msra.mxu0 %v201
    %247 = vmatprep.subr.mxu0 0.0
    %248 = vmatpush2.msra.mxu0 0.0
    %249 = vmatprep.subr.mxu0 0.0
    %250 = vmatpush2.msra.mxu0 0.0
    %251 = vmatprep.subr.mxu0 0.0
    %252 = vmatpush2.msra.mxu0 0.0
    %253 = vmatprep.subr.mxu0 0.0
    %254 = vmatpush2.msra.mxu0 0.0
    %255 = vmatprep.subr.mxu0 0.0
    %256 = vmatpush2.msra.mxu0 0.0
    %257 = vmatprep.subr.mxu0 0.0
    %258 = vmatpush2.msra.mxu0 0.0
    %259 = vmatprep.subr.mxu0 0.0
    %260 = vmatpush2.msra.mxu0 0.0
    %261 = vmatprep.subr.mxu0 0.0
    %262 = vmatpush2.msra.mxu0 0.0
    %263 = vmatprep.subr.mxu0 0.0
    %264 = vmatpush2.msra.mxu0 0.0
    %265 = vmatprep.subr.mxu0 0.0
    %266 = vmatpush2.msra.mxu0 0.0
    %267 = vmatprep.subr.mxu0 0.0
    %268 = vmatpush2.msra.mxu0 0.0
    %269 = vmatprep.subr.mxu0 0.0
    %270 = vmatpush2.msra.mxu0 0.0
    %271 = vmatprep.subr.mxu0 0.0
    %272 = vmatpush2.msra.mxu0 0.0
    %273 = vmatprep.subr.mxu0 0.0
    %274 = vmatpush2.msra.mxu0 0.0
    %275 = vmatprep.subr.mxu0 0.0
    %276 = vmatpush2.msra.mxu0 0.0
    %277 = vmatprep.subr.mxu0 0.0
    %278 = vmatpush2.msra.mxu0 0.0
    %279 = vmatprep.mubr.f32.mxu0 0.0
    %280 = vmatmul.mubr.f32.gmra.mxu0 %v213
    %v281 = vpop.f32.mrf.mxu0
    %v282 = vadd.f32 %v210, %v281
    %v283 = vpop.f32.mrf.mxu0
    %284 = vdwg.mxu0
    %vm285 = vcmask 64512
    %286 = vst.msk [vmem:[#allocation2] sm:$0xff] %vm285, %v282
    // Predicated region
    $region30: #{tpu_custom_call.1} parent=1 // pred_check
      _
    $region31: #{tpu_custom_call.1} parent=1 // pred_check_branch
      %288 = sbr.rel (0) target = $region33
    $region32: #{tpu_custom_call.1} parent=1 // pred_region
      %s290 = ssub.s32 128, 128
      %291 = vsyncadd [#allocation3], %s290
      %s293 = sshll.u32 [#allocation2], 4
      %s294 = int_to_ptr.vmem [resolvable:$true] %s293
      %296 = dma.vmem_to_hbm [thread:$0]  %s294, 128, %s7, [#allocation3]
    $region33: #{tpu_custom_call.1} parent=1 // pred_fallthru
      _
    // Predicated region
    $region34: #{tpu_custom_call.1} parent=1 // pred_check
      _
    $region35: #{tpu_custom_call.1} parent=1 // pred_check_branch
      %298 = sbr.rel (0) target = $region37
    $region36: #{tpu_custom_call.1} parent=1 // pred_region
      %299 = dma.done [#allocation3], 128
    $region37: #{tpu_custom_call.1} parent=1 // pred_fallthru
      _
    %300 = vsyncpa [#allocation3], 1

</llo_original>
